<compile_context>
chip_gen: v5e
topology: v5e:2x2
jax: 0.10.0
libtpu: 0.0.40
codegen_flags: <defaults>
</compile_context>

<pallas_src>
import functools
import math

import jax
import jax.numpy as jnp
import numpy as np
from jax import lax
from jax.experimental import pallas as pl
from jax.experimental.pallas import tpu as pltpu

# Model hyperparameters (Block(dim=32, num_heads=4), mlp_ratio=4.0)
DIM = 32
HEADS = 4
HEAD_DIM = DIM // HEADS
MLP_HIDDEN = int(DIM * 4.0)
EPS = 1e-5  # nn.LayerNorm default
W_ATTN_COLS = 2 * DIM + HEADS * DIM   # [Wq*scale | Wk | Wvp_0 .. Wvp_{H-1}]
GELU_C0 = 0.7978845608028654          # sqrt(2/pi)
GELU_C1 = 0.044715


def _layernorm(x, gamma, beta):
    """Fused LayerNorm: one pass producing sum(x) and sum(x*x)."""
    inv_d = 1.0 / x.shape[-1]
    s1 = jnp.sum(x, axis=-1, keepdims=True)
    s2 = jnp.sum(x * x, axis=-1, keepdims=True)
    mu = s1 * inv_d
    var = s2 * inv_d - mu * mu            # E[x^2] - E[x]^2 (biased, as in torch)
    return (x - mu) * lax.rsqrt(var + EPS) * gamma + beta


def block_kernel(x_ref, g1_ref, b1_ref,
                 wattn_ref, bproj_ref,
                 g2_ref, b2_ref,
                 wfc1_ref, bfc1_ref, wfc2_ref, bfc2_ref,
                 o_ref, *, tb, n):
    """One grid step == TB batch elements (= tb*n rows). All math in f32."""
    x = x_ref[...]                                            # (R, C), R = tb*n

    # ---- attention branch: x + MHSA(LN1(x)) with proj folded into Wvp ----
    xn = _layernorm(x, g1_ref[...], b1_ref[...])
    # One fused (R, C) @ (C, 2C + H*C) matmul: attention scale is folded into
    # the Q columns and the output projection is folded into per-head value
    # weights (Wvp_h = Wv_h @ Wproj_h) wrapper-side.
    qkv = jnp.dot(xn, wattn_ref[...], preferred_element_type=jnp.float32)  # (R, 192)

    attn = None
    for h in range(HEADS):                                    # static, H=4
        q = qkv[:, h * HEAD_DIM:(h + 1) * HEAD_DIM].reshape(tb, n, HEAD_DIM)
        k = qkv[:, DIM + h * HEAD_DIM: DIM + (h + 1) * HEAD_DIM].reshape(tb, n, HEAD_DIM)
        vp = qkv[:, 2 * DIM + h * DIM: 2 * DIM + (h + 1) * DIM].reshape(tb, n, DIM)
        # scores: contract last dims, batch over tb -- no explicit k.T
        s = lax.dot_general(q, k, (((2,), (2,)), ((0,), (0,))),
                            preferred_element_type=jnp.float32)           # (tb, n, n)
        s = s - jnp.max(s, axis=-1, keepdims=True)
        p = jnp.exp(s)
        p = p * pl.reciprocal(jnp.sum(p, axis=-1, keepdims=True), approx=True)
        # value+projection in one batched matmul -> already (tb, n, C) lanes
        oh = lax.dot_general(p, vp, (((2,), (1,)), ((0,), (0,))),
                             preferred_element_type=jnp.float32)          # (tb, n, C)
        attn = oh if attn is None else attn + oh

    attn_proj = attn.reshape(tb * n, DIM) + bproj_ref[...]    # (R, C)
    x1 = x + attn_proj

    # ---- MLP branch: x1 + fc2(gelu(fc1(LN2(x1)))) ----
    xn2 = _layernorm(x1, g2_ref[...], b2_ref[...])
    h1 = jnp.dot(xn2, wfc1_ref[...], preferred_element_type=jnp.float32) + bfc1_ref[...]
    # tanh-approximate GELU (EUP); deviation from exact erf-GELU ~1e-4 here.
    h1 = 0.5 * h1 * (1.0 + jnp.tanh(GELU_C0 * (h1 + GELU_C1 * h1 * h1 * h1)))
    h2 = jnp.dot(h1, wfc2_ref[...], preferred_element_type=jnp.float32) + bfc2_ref[...]

    o_ref[...] = x1 + h2                                      # (R, C) slab store


def _choose_tb(B, N, target_rows=2048, min_split_rows=512):
    """Batches per grid step.

    Small workloads (B*N <= target_rows) run as a single grid step: the fixed
    per-step overhead dominates tiny slabs and a cross-TC split is pure
    overhead there.  Large workloads take the largest divisor of B whose slab
    fits in target_rows, keeping TB*N a multiple of 8 (sublane tile) and at
    least min_split_rows tall; otherwise fall back to one full-array step.
    """
    total = B * N
    if total <= target_rows:
        return B
    best = 0
    for tb in range(min(B, max(1, target_rows // max(N, 1))), 0, -1):
        if B % tb == 0 and (tb * N) % 8 == 0:
            best = tb
            break
    if best == 0 or best * N < min_split_rows:
        return B
    return best


def _const_spec(shape):
    zeros = (0,) * len(shape)
    return pl.BlockSpec(shape, lambda i, _z=zeros: _z)


def block_forward(x, kernel_params):
    B, N, C = x.shape
    TB = _choose_tb(B, N)
    R = TB * N                                  # rows per grid step
    x2 = x.reshape(B * N, C)                    # lane-dim = C, sublane-dense rows

    in_specs = [
        pl.BlockSpec((R, C), lambda i: (i, 0)),        # x rows
        _const_spec((1, C)), _const_spec((1, C)),      # ln1 gamma, beta
        _const_spec((C, W_ATTN_COLS)),                 # fused [Wq*scale|Wk|Wvp_h]
        _const_spec((1, C)),                           # proj bias
        _const_spec((1, C)), _const_spec((1, C)),      # ln2 gamma, beta
        _const_spec((C, MLP_HIDDEN)), _const_spec((1, MLP_HIDDEN)),   # fc1
        _const_spec((MLP_HIDDEN, C)), _const_spec((1, C)),            # fc2
    ]

    out2 = pl.pallas_call(
        functools.partial(block_kernel, tb=TB, n=N),
        out_shape=jax.ShapeDtypeStruct((B * N, C), jnp.float32),
        grid_spec=pltpu.PrefetchScalarGridSpec(
            num_scalar_prefetch=0,
            grid=(B // TB,),
            in_specs=in_specs,
            out_specs=pl.BlockSpec((R, C), lambda i: (i, 0)),
        ),
        compiler_params=pltpu.CompilerParams(dimension_semantics=("parallel",)),
    )(x2, *kernel_params)

    return out2.reshape(B, N, C)


def make_params(key):
    """Deterministic PyTorch-convention params (out_features, in_features)."""
    ks = jax.random.split(key, 8)
    scale = 0.05
    wqkv = scale * jax.random.normal(ks[0], (3 * DIM, DIM), jnp.float32)
    wproj = scale * jax.random.normal(ks[1], (DIM, DIM), jnp.float32)
    bproj = scale * jax.random.normal(ks[2], (DIM,), jnp.float32)
    g1 = jnp.ones((DIM,), jnp.float32) + 0.1 * jax.random.normal(ks[3], (DIM,), jnp.float32)
    b1 = 0.1 * jax.random.normal(ks[4], (DIM,), jnp.float32)
    g2 = jnp.ones((DIM,), jnp.float32) + 0.1 * jax.random.normal(ks[5], (DIM,), jnp.float32)
    b2 = 0.1 * jax.random.normal(ks[6], (DIM,), jnp.float32)
    kf = jax.random.split(ks[7], 4)
    wfc1 = scale * jax.random.normal(kf[0], (MLP_HIDDEN, DIM), jnp.float32)
    bfc1 = scale * jax.random.normal(kf[1], (MLP_HIDDEN,), jnp.float32)
    wfc2 = scale * jax.random.normal(kf[2], (DIM, MLP_HIDDEN), jnp.float32)
    bfc2 = scale * jax.random.normal(kf[3], (DIM,), jnp.float32)
    return dict(wqkv=wqkv, wproj=wproj, bproj=bproj, g1=g1, b1=b1,
                g2=g2, b2=b2, wfc1=wfc1, bfc1=bfc1, wfc2=wfc2, bfc2=bfc2)


def params_for_kernel(p):
    """Repack PyTorch-layout params into the kernel's fused, folded layout.

    - attention scale folded into the Q columns,
    - output projection folded into per-head value weights:
        concat_h(p_h @ v_h) @ Wproj.T == sum_h p_h @ (x_n @ (Wv_h @ Wproj_h))
      so the kernel never concatenates 8-lane head outputs.
    """
    attn_scale = HEAD_DIM ** -0.5
    wqkv_t = p["wqkv"].T                                 # (C, 3C): [q | k | v], head-major cols
    wq = wqkv_t[:, :DIM] * attn_scale                    # (C, C)
    wk = wqkv_t[:, DIM:2 * DIM]                          # (C, C)
    wv = wqkv_t[:, 2 * DIM:3 * DIM]                      # (C, C)
    wproj_t = p["wproj"].T                               # (C_in=(h,d), C_out)
    wvp = [wv[:, h * HEAD_DIM:(h + 1) * HEAD_DIM]
           @ wproj_t[h * HEAD_DIM:(h + 1) * HEAD_DIM, :]
           for h in range(HEADS)]                        # each (C, C)
    w_attn = jnp.concatenate([wq, wk] + wvp, axis=1)     # (C, 2C + H*C)
    return (
        p["g1"].reshape(1, DIM), p["b1"].reshape(1, DIM),
        w_attn,
        p["bproj"].reshape(1, DIM),
        p["g2"].reshape(1, DIM), p["b2"].reshape(1, DIM),
        p["wfc1"].T, p["bfc1"].reshape(1, MLP_HIDDEN),
        p["wfc2"].T, p["bfc2"].reshape(1, DIM),
    )


def reference_block(x, p):
    """Pure-JAX replica of the PyTorch forward (for verification)."""
    B, N, C = x.shape

    def ln(y, g, b):
        mu = y.mean(-1, keepdims=True)
        var = ((y - mu) ** 2).mean(-1, keepdims=True)
        return (y - mu) / jnp.sqrt(var + EPS) * g + b

    xn = ln(x, p["g1"], p["b1"])
    qkv = (xn @ p["wqkv"].T).reshape(B, N, 3, HEADS, HEAD_DIM).transpose(2, 0, 3, 1, 4)
    q, k, v = qkv[0], qkv[1], qkv[2]
    attn = jnp.einsum("bhnd,bhmd->bhnm", q, k) * (HEAD_DIM ** -0.5)
    attn = jax.nn.softmax(attn, axis=-1)
    o = jnp.einsum("bhnm,bhmd->bhnd", attn, v).transpose(0, 2, 1, 3).reshape(B, N, C)
    x = x + o @ p["wproj"].T + p["bproj"]
    xn2 = ln(x, p["g2"], p["b2"])
    h = xn2 @ p["wfc1"].T + p["bfc1"]
    h = jax.nn.gelu(h, approximate=False)        # PyTorch nn.GELU default (exact erf)
    h = h @ p["wfc2"].T + p["bfc2"]
    return x + h


if __name__ == "__main__":
    B, N, C = 2, 8, DIM
    key = jax.random.PRNGKey(0)
    kx, kp = jax.random.split(key)
    x = jax.random.normal(kx, (B, N, C), jnp.float32)
    params = make_params(kp)

    out = block_forward(x, params_for_kernel(params))
    out = jax.block_until_ready(out)

    ref = reference_block(x, params)
    # Tolerance covers the approximate EUP reciprocal in softmax, the
    # tanh-GELU approximation, and the (exact-in-math, reordered-in-rounding)
    # Wv@Wproj weight fold; all are ~1e-4-level here.
    np.testing.assert_allclose(np.asarray(out), np.asarray(ref), atol=2e-3, rtol=2e-3)

    print("KERNEL_OK")
</pallas_src>

<mosaic_0001>
module attributes {stable_mosaic.version = 11 : i64} {
  func.func @block_kernel(%arg0: i32, %arg1: memref<16x32xf32, #tpu.memory_space<vmem>>, %arg2: memref<1x32xf32, #tpu.memory_space<vmem>>, %arg3: memref<1x32xf32, #tpu.memory_space<vmem>>, %arg4: memref<32x192xf32, #tpu.memory_space<vmem>>, %arg5: memref<1x32xf32, #tpu.memory_space<vmem>>, %arg6: memref<1x32xf32, #tpu.memory_space<vmem>>, %arg7: memref<1x32xf32, #tpu.memory_space<vmem>>, %arg8: memref<32x128xf32, #tpu.memory_space<vmem>>, %arg9: memref<1x128xf32, #tpu.memory_space<vmem>>, %arg10: memref<128x32xf32, #tpu.memory_space<vmem>>, %arg11: memref<1x32xf32, #tpu.memory_space<vmem>>, %arg12: memref<16x32xf32, #tpu.memory_space<vmem>>) attributes {dimension_semantics = [#tpu.dimension_semantics<parallel>], iteration_bounds = array<i64: 1>, scalar_prefetch = 0 : i64, scratch_operands = 0 : i64, tpu.core_type = #tpu.core_type<tc>, window_params = [{transform_indices = @transform_0, window_bounds = array<i64: 16, 32>}, {pipeline_mode = #tpu.pipeline_mode<synchronous>, transform_indices = @transform_1, window_bounds = array<i64: 1, 32>}, {pipeline_mode = #tpu.pipeline_mode<synchronous>, transform_indices = @transform_2, window_bounds = array<i64: 1, 32>}, {pipeline_mode = #tpu.pipeline_mode<synchronous>, transform_indices = @transform_3, window_bounds = array<i64: 32, 192>}, {pipeline_mode = #tpu.pipeline_mode<synchronous>, transform_indices = @transform_4, window_bounds = array<i64: 1, 32>}, {pipeline_mode = #tpu.pipeline_mode<synchronous>, transform_indices = @transform_5, window_bounds = array<i64: 1, 32>}, {pipeline_mode = #tpu.pipeline_mode<synchronous>, transform_indices = @transform_6, window_bounds = array<i64: 1, 32>}, {pipeline_mode = #tpu.pipeline_mode<synchronous>, transform_indices = @transform_7, window_bounds = array<i64: 32, 128>}, {pipeline_mode = #tpu.pipeline_mode<synchronous>, transform_indices = @transform_8, window_bounds = array<i64: 1, 128>}, {pipeline_mode = #tpu.pipeline_mode<synchronous>, transform_indices = @transform_9, window_bounds = array<i64: 128, 32>}, {pipeline_mode = #tpu.pipeline_mode<synchronous>, transform_indices = @transform_10, window_bounds = array<i64: 1, 32>}, {transform_indices = @transform_11, window_bounds = array<i64: 16, 32>}]} {
    %c0 = arith.constant 0 : index
    %c0_0 = arith.constant 0 : index
    %0 = vector.load %arg1[%c0, %c0_0] : memref<16x32xf32, #tpu.memory_space<vmem>>, vector<16x32xf32>
    %c0_1 = arith.constant 0 : index
    %c0_2 = arith.constant 0 : index
    %1 = vector.load %arg2[%c0_1, %c0_2] : memref<1x32xf32, #tpu.memory_space<vmem>>, vector<1x32xf32>
    %c0_3 = arith.constant 0 : index
    %c0_4 = arith.constant 0 : index
    %2 = vector.load %arg3[%c0_3, %c0_4] : memref<1x32xf32, #tpu.memory_space<vmem>>, vector<1x32xf32>
    %cst = arith.constant dense<0.000000e+00> : vector<16xf32>
    %3 = vector.multi_reduction <add>, %0, %cst [1] : vector<16x32xf32> to vector<16xf32>
    %4 = vector.shape_cast %3 : vector<16xf32> to vector<16x1xf32>
    %5 = arith.mulf %0, %0 : vector<16x32xf32>
    %cst_5 = arith.constant dense<0.000000e+00> : vector<16xf32>
    %6 = vector.multi_reduction <add>, %5, %cst_5 [1] : vector<16x32xf32> to vector<16xf32>
    %7 = vector.shape_cast %6 : vector<16xf32> to vector<16x1xf32>
    %cst_6 = arith.constant 3.125000e-02 : f32
    %8 = vector.broadcast %cst_6 : f32 to vector<16x1xf32>
    %9 = arith.mulf %4, %8 : vector<16x1xf32>
    %cst_7 = arith.constant 3.125000e-02 : f32
    %10 = vector.broadcast %cst_7 : f32 to vector<16x1xf32>
    %11 = arith.mulf %7, %10 : vector<16x1xf32>
    %12 = arith.mulf %9, %9 : vector<16x1xf32>
    %13 = arith.subf %11, %12 : vector<16x1xf32>
    %14 = vector.broadcast %9 : vector<16x1xf32> to vector<16x32xf32>
    %15 = arith.subf %0, %14 : vector<16x32xf32>
    %cst_8 = arith.constant 9.99999974E-6 : f32
    %16 = vector.broadcast %cst_8 : f32 to vector<16x1xf32>
    %17 = arith.addf %13, %16 : vector<16x1xf32>
    %18 = math.rsqrt %17 : vector<16x1xf32>
    %19 = vector.broadcast %18 : vector<16x1xf32> to vector<16x32xf32>
    %20 = arith.mulf %15, %19 : vector<16x32xf32>
    %21 = vector.broadcast %1 : vector<1x32xf32> to vector<16x32xf32>
    %22 = arith.mulf %20, %21 : vector<16x32xf32>
    %23 = vector.broadcast %2 : vector<1x32xf32> to vector<16x32xf32>
    %24 = arith.addf %22, %23 : vector<16x32xf32>
    %c0_9 = arith.constant 0 : index
    %c0_10 = arith.constant 0 : index
    %25 = vector.load %arg4[%c0_9, %c0_10] : memref<32x192xf32, #tpu.memory_space<vmem>>, vector<32x192xf32>
    %cst_11 = arith.constant dense<0.000000e+00> : vector<16x192xf32>
    %26 = tpu.matmul %24, %25, %cst_11 {dimension_numbers = #tpu.dot_dimension_numbers<[1], [0], [0], [1], [0, 0, 1, 1], [], []>} : vector<16x32xf32>, vector<32x192xf32>, vector<16x192xf32> -> vector<16x192xf32>
    %27 = vector.extract_strided_slice %26 {offsets = [0, 0], sizes = [16, 8], strides = [1, 1]} : vector<16x192xf32> to vector<16x8xf32>
    %28 = vector.shape_cast %27 : vector<16x8xf32> to vector<2x8x8xf32>
    %29 = vector.extract_strided_slice %26 {offsets = [0, 32], sizes = [16, 8], strides = [1, 1]} : vector<16x192xf32> to vector<16x8xf32>
    %30 = vector.shape_cast %29 : vector<16x8xf32> to vector<2x8x8xf32>
    %31 = vector.extract_strided_slice %26 {offsets = [0, 64], sizes = [16, 32], strides = [1, 1]} : vector<16x192xf32> to vector<16x32xf32>
    %32 = vector.shape_cast %31 : vector<16x32xf32> to vector<2x8x32xf32>
    %cst_12 = arith.constant dense<0.000000e+00> : vector<2x8x8xf32>
    %33 = tpu.matmul %28, %30, %cst_12 {dimension_numbers = #tpu.dot_dimension_numbers<[2], [2], [1], [1], [0, 0, 0, 1, 1, 1], [0], [0]>} : vector<2x8x8xf32>, vector<2x8x8xf32>, vector<2x8x8xf32> -> vector<2x8x8xf32>
    %cst_13 = arith.constant dense<0xFF800000> : vector<2x8xf32>
    %34 = vector.multi_reduction <maximumf>, %33, %cst_13 [2] : vector<2x8x8xf32> to vector<2x8xf32>
    %35 = vector.shape_cast %34 : vector<2x8xf32> to vector<2x8x1xf32>
    %36 = vector.broadcast %35 : vector<2x8x1xf32> to vector<2x8x8xf32>
    %37 = arith.subf %33, %36 : vector<2x8x8xf32>
    %38 = math.exp %37 : vector<2x8x8xf32>
    %cst_14 = arith.constant dense<0.000000e+00> : vector<2x8xf32>
    %39 = vector.multi_reduction <add>, %38, %cst_14 [2] : vector<2x8x8xf32> to vector<2x8xf32>
    %40 = vector.shape_cast %39 : vector<2x8xf32> to vector<2x8x1xf32>
    %41 = tpu.reciprocal %40 {approx = true} : vector<2x8x1xf32> -> vector<2x8x1xf32>
    %42 = vector.broadcast %41 : vector<2x8x1xf32> to vector<2x8x8xf32>
    %43 = arith.mulf %38, %42 : vector<2x8x8xf32>
    %cst_15 = arith.constant dense<0.000000e+00> : vector<2x8x32xf32>
    %44 = tpu.matmul %43, %32, %cst_15 {dimension_numbers = #tpu.dot_dimension_numbers<[2], [1], [1], [2], [0, 0, 0, 1, 1, 2], [0], [0]>} : vector<2x8x8xf32>, vector<2x8x32xf32>, vector<2x8x32xf32> -> vector<2x8x32xf32>
    %45 = vector.extract_strided_slice %26 {offsets = [0, 8], sizes = [16, 8], strides = [1, 1]} : vector<16x192xf32> to vector<16x8xf32>
    %46 = vector.shape_cast %45 : vector<16x8xf32> to vector<2x8x8xf32>
    %47 = vector.extract_strided_slice %26 {offsets = [0, 40], sizes = [16, 8], strides = [1, 1]} : vector<16x192xf32> to vector<16x8xf32>
    %48 = vector.shape_cast %47 : vector<16x8xf32> to vector<2x8x8xf32>
    %49 = vector.extract_strided_slice %26 {offsets = [0, 96], sizes = [16, 32], strides = [1, 1]} : vector<16x192xf32> to vector<16x32xf32>
    %50 = vector.shape_cast %49 : vector<16x32xf32> to vector<2x8x32xf32>
    %cst_16 = arith.constant dense<0.000000e+00> : vector<2x8x8xf32>
    %51 = tpu.matmul %46, %48, %cst_16 {dimension_numbers = #tpu.dot_dimension_numbers<[2], [2], [1], [1], [0, 0, 0, 1, 1, 1], [0], [0]>} : vector<2x8x8xf32>, vector<2x8x8xf32>, vector<2x8x8xf32> -> vector<2x8x8xf32>
    %cst_17 = arith.constant dense<0xFF800000> : vector<2x8xf32>
    %52 = vector.multi_reduction <maximumf>, %51, %cst_17 [2] : vector<2x8x8xf32> to vector<2x8xf32>
    %53 = vector.shape_cast %52 : vector<2x8xf32> to vector<2x8x1xf32>
    %54 = vector.broadcast %53 : vector<2x8x1xf32> to vector<2x8x8xf32>
    %55 = arith.subf %51, %54 : vector<2x8x8xf32>
    %56 = math.exp %55 : vector<2x8x8xf32>
    %cst_18 = arith.constant dense<0.000000e+00> : vector<2x8xf32>
    %57 = vector.multi_reduction <add>, %56, %cst_18 [2] : vector<2x8x8xf32> to vector<2x8xf32>
    %58 = vector.shape_cast %57 : vector<2x8xf32> to vector<2x8x1xf32>
    %59 = tpu.reciprocal %58 {approx = true} : vector<2x8x1xf32> -> vector<2x8x1xf32>
    %60 = vector.broadcast %59 : vector<2x8x1xf32> to vector<2x8x8xf32>
    %61 = arith.mulf %56, %60 : vector<2x8x8xf32>
    %cst_19 = arith.constant dense<0.000000e+00> : vector<2x8x32xf32>
    %62 = tpu.matmul %61, %50, %cst_19 {dimension_numbers = #tpu.dot_dimension_numbers<[2], [1], [1], [2], [0, 0, 0, 1, 1, 2], [0], [0]>} : vector<2x8x8xf32>, vector<2x8x32xf32>, vector<2x8x32xf32> -> vector<2x8x32xf32>
    %63 = arith.addf %44, %62 : vector<2x8x32xf32>
    %64 = vector.extract_strided_slice %26 {offsets = [0, 16], sizes = [16, 8], strides = [1, 1]} : vector<16x192xf32> to vector<16x8xf32>
    %65 = vector.shape_cast %64 : vector<16x8xf32> to vector<2x8x8xf32>
    %66 = vector.extract_strided_slice %26 {offsets = [0, 48], sizes = [16, 8], strides = [1, 1]} : vector<16x192xf32> to vector<16x8xf32>
    %67 = vector.shape_cast %66 : vector<16x8xf32> to vector<2x8x8xf32>
    %68 = vector.extract_strided_slice %26 {offsets = [0, 128], sizes = [16, 32], strides = [1, 1]} : vector<16x192xf32> to vector<16x32xf32>
    %69 = vector.shape_cast %68 : vector<16x32xf32> to vector<2x8x32xf32>
    %cst_20 = arith.constant dense<0.000000e+00> : vector<2x8x8xf32>
    %70 = tpu.matmul %65, %67, %cst_20 {dimension_numbers = #tpu.dot_dimension_numbers<[2], [2], [1], [1], [0, 0, 0, 1, 1, 1], [0], [0]>} : vector<2x8x8xf32>, vector<2x8x8xf32>, vector<2x8x8xf32> -> vector<2x8x8xf32>
    %cst_21 = arith.constant dense<0xFF800000> : vector<2x8xf32>
    %71 = vector.multi_reduction <maximumf>, %70, %cst_21 [2] : vector<2x8x8xf32> to vector<2x8xf32>
    %72 = vector.shape_cast %71 : vector<2x8xf32> to vector<2x8x1xf32>
    %73 = vector.broadcast %72 : vector<2x8x1xf32> to vector<2x8x8xf32>
    %74 = arith.subf %70, %73 : vector<2x8x8xf32>
    %75 = math.exp %74 : vector<2x8x8xf32>
    %cst_22 = arith.constant dense<0.000000e+00> : vector<2x8xf32>
    %76 = vector.multi_reduction <add>, %75, %cst_22 [2] : vector<2x8x8xf32> to vector<2x8xf32>
    %77 = vector.shape_cast %76 : vector<2x8xf32> to vector<2x8x1xf32>
    %78 = tpu.reciprocal %77 {approx = true} : vector<2x8x1xf32> -> vector<2x8x1xf32>
    %79 = vector.broadcast %78 : vector<2x8x1xf32> to vector<2x8x8xf32>
    %80 = arith.mulf %75, %79 : vector<2x8x8xf32>
    %cst_23 = arith.constant dense<0.000000e+00> : vector<2x8x32xf32>
    %81 = tpu.matmul %80, %69, %cst_23 {dimension_numbers = #tpu.dot_dimension_numbers<[2], [1], [1], [2], [0, 0, 0, 1, 1, 2], [0], [0]>} : vector<2x8x8xf32>, vector<2x8x32xf32>, vector<2x8x32xf32> -> vector<2x8x32xf32>
    %82 = arith.addf %63, %81 : vector<2x8x32xf32>
    %83 = vector.extract_strided_slice %26 {offsets = [0, 24], sizes = [16, 8], strides = [1, 1]} : vector<16x192xf32> to vector<16x8xf32>
    %84 = vector.shape_cast %83 : vector<16x8xf32> to vector<2x8x8xf32>
    %85 = vector.extract_strided_slice %26 {offsets = [0, 56], sizes = [16, 8], strides = [1, 1]} : vector<16x192xf32> to vector<16x8xf32>
    %86 = vector.shape_cast %85 : vector<16x8xf32> to vector<2x8x8xf32>
    %87 = vector.extract_strided_slice %26 {offsets = [0, 160], sizes = [16, 32], strides = [1, 1]} : vector<16x192xf32> to vector<16x32xf32>
    %88 = vector.shape_cast %87 : vector<16x32xf32> to vector<2x8x32xf32>
    %cst_24 = arith.constant dense<0.000000e+00> : vector<2x8x8xf32>
    %89 = tpu.matmul %84, %86, %cst_24 {dimension_numbers = #tpu.dot_dimension_numbers<[2], [2], [1], [1], [0, 0, 0, 1, 1, 1], [0], [0]>} : vector<2x8x8xf32>, vector<2x8x8xf32>, vector<2x8x8xf32> -> vector<2x8x8xf32>
    %cst_25 = arith.constant dense<0xFF800000> : vector<2x8xf32>
    %90 = vector.multi_reduction <maximumf>, %89, %cst_25 [2] : vector<2x8x8xf32> to vector<2x8xf32>
    %91 = vector.shape_cast %90 : vector<2x8xf32> to vector<2x8x1xf32>
    %92 = vector.broadcast %91 : vector<2x8x1xf32> to vector<2x8x8xf32>
    %93 = arith.subf %89, %92 : vector<2x8x8xf32>
    %94 = math.exp %93 : vector<2x8x8xf32>
    %cst_26 = arith.constant dense<0.000000e+00> : vector<2x8xf32>
    %95 = vector.multi_reduction <add>, %94, %cst_26 [2] : vector<2x8x8xf32> to vector<2x8xf32>
    %96 = vector.shape_cast %95 : vector<2x8xf32> to vector<2x8x1xf32>
    %97 = tpu.reciprocal %96 {approx = true} : vector<2x8x1xf32> -> vector<2x8x1xf32>
    %98 = vector.broadcast %97 : vector<2x8x1xf32> to vector<2x8x8xf32>
    %99 = arith.mulf %94, %98 : vector<2x8x8xf32>
    %cst_27 = arith.constant dense<0.000000e+00> : vector<2x8x32xf32>
    %100 = tpu.matmul %99, %88, %cst_27 {dimension_numbers = #tpu.dot_dimension_numbers<[2], [1], [1], [2], [0, 0, 0, 1, 1, 2], [0], [0]>} : vector<2x8x8xf32>, vector<2x8x32xf32>, vector<2x8x32xf32> -> vector<2x8x32xf32>
    %101 = arith.addf %82, %100 : vector<2x8x32xf32>
    %102 = vector.shape_cast %101 : vector<2x8x32xf32> to vector<16x32xf32>
    %c0_28 = arith.constant 0 : index
    %c0_29 = arith.constant 0 : index
    %103 = vector.load %arg5[%c0_28, %c0_29] : memref<1x32xf32, #tpu.memory_space<vmem>>, vector<1x32xf32>
    %104 = vector.broadcast %103 : vector<1x32xf32> to vector<16x32xf32>
    %105 = arith.addf %102, %104 : vector<16x32xf32>
    %106 = arith.addf %0, %105 : vector<16x32xf32>
    %c0_30 = arith.constant 0 : index
    %c0_31 = arith.constant 0 : index
    %107 = vector.load %arg6[%c0_30, %c0_31] : memref<1x32xf32, #tpu.memory_space<vmem>>, vector<1x32xf32>
    %c0_32 = arith.constant 0 : index
    %c0_33 = arith.constant 0 : index
    %108 = vector.load %arg7[%c0_32, %c0_33] : memref<1x32xf32, #tpu.memory_space<vmem>>, vector<1x32xf32>
    %cst_34 = arith.constant dense<0.000000e+00> : vector<16xf32>
    %109 = vector.multi_reduction <add>, %106, %cst_34 [1] : vector<16x32xf32> to vector<16xf32>
    %110 = vector.shape_cast %109 : vector<16xf32> to vector<16x1xf32>
    %111 = arith.mulf %106, %106 : vector<16x32xf32>
    %cst_35 = arith.constant dense<0.000000e+00> : vector<16xf32>
    %112 = vector.multi_reduction <add>, %111, %cst_35 [1] : vector<16x32xf32> to vector<16xf32>
    %113 = vector.shape_cast %112 : vector<16xf32> to vector<16x1xf32>
    %cst_36 = arith.constant 3.125000e-02 : f32
    %114 = vector.broadcast %cst_36 : f32 to vector<16x1xf32>
    %115 = arith.mulf %110, %114 : vector<16x1xf32>
    %cst_37 = arith.constant 3.125000e-02 : f32
    %116 = vector.broadcast %cst_37 : f32 to vector<16x1xf32>
    %117 = arith.mulf %113, %116 : vector<16x1xf32>
    %118 = arith.mulf %115, %115 : vector<16x1xf32>
    %119 = arith.subf %117, %118 : vector<16x1xf32>
    %120 = vector.broadcast %115 : vector<16x1xf32> to vector<16x32xf32>
    %121 = arith.subf %106, %120 : vector<16x32xf32>
    %cst_38 = arith.constant 9.99999974E-6 : f32
    %122 = vector.broadcast %cst_38 : f32 to vector<16x1xf32>
    %123 = arith.addf %119, %122 : vector<16x1xf32>
    %124 = math.rsqrt %123 : vector<16x1xf32>
    %125 = vector.broadcast %124 : vector<16x1xf32> to vector<16x32xf32>
    %126 = arith.mulf %121, %125 : vector<16x32xf32>
    %127 = vector.broadcast %107 : vector<1x32xf32> to vector<16x32xf32>
    %128 = arith.mulf %126, %127 : vector<16x32xf32>
    %129 = vector.broadcast %108 : vector<1x32xf32> to vector<16x32xf32>
    %130 = arith.addf %128, %129 : vector<16x32xf32>
    %c0_39 = arith.constant 0 : index
    %c0_40 = arith.constant 0 : index
    %131 = vector.load %arg8[%c0_39, %c0_40] : memref<32x128xf32, #tpu.memory_space<vmem>>, vector<32x128xf32>
    %cst_41 = arith.constant dense<0.000000e+00> : vector<16x128xf32>
    %132 = tpu.matmul %130, %131, %cst_41 {dimension_numbers = #tpu.dot_dimension_numbers<[1], [0], [0], [1], [0, 0, 1, 1], [], []>} : vector<16x32xf32>, vector<32x128xf32>, vector<16x128xf32> -> vector<16x128xf32>
    %c0_42 = arith.constant 0 : index
    %c0_43 = arith.constant 0 : index
    %133 = vector.load %arg9[%c0_42, %c0_43] : memref<1x128xf32, #tpu.memory_space<vmem>>, vector<1x128xf32>
    %134 = vector.broadcast %133 : vector<1x128xf32> to vector<16x128xf32>
    %135 = arith.addf %132, %134 : vector<16x128xf32>
    %cst_44 = arith.constant 5.000000e-01 : f32
    %136 = vector.broadcast %cst_44 : f32 to vector<16x128xf32>
    %137 = arith.mulf %136, %135 : vector<16x128xf32>
    %cst_45 = arith.constant 4.471500e-02 : f32
    %138 = vector.broadcast %cst_45 : f32 to vector<16x128xf32>
    %139 = arith.mulf %138, %135 : vector<16x128xf32>
    %140 = arith.mulf %139, %135 : vector<16x128xf32>
    %141 = arith.mulf %140, %135 : vector<16x128xf32>
    %142 = arith.addf %135, %141 : vector<16x128xf32>
    %cst_46 = arith.constant 0.797884583 : f32
    %143 = vector.broadcast %cst_46 : f32 to vector<16x128xf32>
    %144 = arith.mulf %143, %142 : vector<16x128xf32>
    %145 = math.tanh %144 : vector<16x128xf32>
    %cst_47 = arith.constant 1.000000e+00 : f32
    %146 = vector.broadcast %cst_47 : f32 to vector<16x128xf32>
    %147 = arith.addf %146, %145 : vector<16x128xf32>
    %148 = arith.mulf %137, %147 : vector<16x128xf32>
    %c0_48 = arith.constant 0 : index
    %c0_49 = arith.constant 0 : index
    %149 = vector.load %arg10[%c0_48, %c0_49] : memref<128x32xf32, #tpu.memory_space<vmem>>, vector<128x32xf32>
    %cst_50 = arith.constant dense<0.000000e+00> : vector<16x32xf32>
    %150 = tpu.matmul %148, %149, %cst_50 {dimension_numbers = #tpu.dot_dimension_numbers<[1], [0], [0], [1], [0, 0, 1, 1], [], []>} : vector<16x128xf32>, vector<128x32xf32>, vector<16x32xf32> -> vector<16x32xf32>
    %c0_51 = arith.constant 0 : index
    %c0_52 = arith.constant 0 : index
    %151 = vector.load %arg11[%c0_51, %c0_52] : memref<1x32xf32, #tpu.memory_space<vmem>>, vector<1x32xf32>
    %152 = vector.broadcast %151 : vector<1x32xf32> to vector<16x32xf32>
    %153 = arith.addf %150, %152 : vector<16x32xf32>
    %154 = arith.addf %106, %153 : vector<16x32xf32>
    %c0_53 = arith.constant 0 : index
    %c0_54 = arith.constant 0 : index
    %155 = vector.load %arg12[%c0_53, %c0_54] : memref<16x32xf32, #tpu.memory_space<vmem>>, vector<16x32xf32>
    tpu.vector_store %arg12[%c0_53, %c0_54], %154 {strides = array<i32>} : memref<16x32xf32, #tpu.memory_space<vmem>>, vector<16x32xf32>,
    return
  }
  func.func @transform_0(%arg0: i32) -> (i32, i32) {
    %c0_i32 = arith.constant 0 : i32
    %c0_i32_0 = arith.constant 0 : i32
    return %arg0, %c0_i32 : i32, i32
  }
  func.func @transform_1(%arg0: i32) -> (i32, i32) {
    %c0_i32 = arith.constant 0 : i32
    %c0_i32_0 = arith.constant 0 : i32
    %c0_i32_1 = arith.constant 0 : i32
    return %c0_i32, %c0_i32_0 : i32, i32
  }
  func.func @transform_2(%arg0: i32) -> (i32, i32) {
    %c0_i32 = arith.constant 0 : i32
    %c0_i32_0 = arith.constant 0 : i32
    %c0_i32_1 = arith.constant 0 : i32
    return %c0_i32, %c0_i32_0 : i32, i32
  }
  func.func @transform_3(%arg0: i32) -> (i32, i32) {
    %c0_i32 = arith.constant 0 : i32
    %c0_i32_0 = arith.constant 0 : i32
    %c0_i32_1 = arith.constant 0 : i32
    return %c0_i32, %c0_i32_0 : i32, i32
  }
  func.func @transform_4(%arg0: i32) -> (i32, i32) {
    %c0_i32 = arith.constant 0 : i32
    %c0_i32_0 = arith.constant 0 : i32
    %c0_i32_1 = arith.constant 0 : i32
    return %c0_i32, %c0_i32_0 : i32, i32
  }
  func.func @transform_5(%arg0: i32) -> (i32, i32) {
    %c0_i32 = arith.constant 0 : i32
    %c0_i32_0 = arith.constant 0 : i32
    %c0_i32_1 = arith.constant 0 : i32
    return %c0_i32, %c0_i32_0 : i32, i32
  }
  func.func @transform_6(%arg0: i32) -> (i32, i32) {
    %c0_i32 = arith.constant 0 : i32
    %c0_i32_0 = arith.constant 0 : i32
    %c0_i32_1 = arith.constant 0 : i32
    return %c0_i32, %c0_i32_0 : i32, i32
  }
  func.func @transform_7(%arg0: i32) -> (i32, i32) {
    %c0_i32 = arith.constant 0 : i32
    %c0_i32_0 = arith.constant 0 : i32
    %c0_i32_1 = arith.constant 0 : i32
    return %c0_i32, %c0_i32_0 : i32, i32
  }
  func.func @transform_8(%arg0: i32) -> (i32, i32) {
    %c0_i32 = arith.constant 0 : i32
    %c0_i32_0 = arith.constant 0 : i32
    %c0_i32_1 = arith.constant 0 : i32
    return %c0_i32, %c0_i32_0 : i32, i32
  }
  func.func @transform_9(%arg0: i32) -> (i32, i32) {
    %c0_i32 = arith.constant 0 : i32
    %c0_i32_0 = arith.constant 0 : i32
    %c0_i32_1 = arith.constant 0 : i32
    return %c0_i32, %c0_i32_0 : i32, i32
  }
  func.func @transform_10(%arg0: i32) -> (i32, i32) {
    %c0_i32 = arith.constant 0 : i32
    %c0_i32_0 = arith.constant 0 : i32
    %c0_i32_1 = arith.constant 0 : i32
    return %c0_i32, %c0_i32_0 : i32, i32
  }
  func.func @transform_11(%arg0: i32) -> (i32, i32) {
    %c0_i32 = arith.constant 0 : i32
    %c0_i32_0 = arith.constant 0 : i32
    return %arg0, %c0_i32 : i32, i32
  }
}

</mosaic_0001>

<llo_original>
// kernel: tpu_custom_call.1
$region0: #{tpu_custom_call.1}
  #allocation0 [shape = 'u32[]', space=smem, size = 0x4, offset = 0x4, fixed_abs, tag = 'smem constant byte address 0x4 - core index']
  #allocation1 [shape = 'u32[72,128]{1,0:T(1,128)}', space=vmem, size = 0x9000, scoped, tag = 'internal scratch']
  %s0 = inlined_call_operand.vmem [shape: f32[16,32], index: 0, kind: input, shape index: {}]
  %s1 = inlined_call_operand.vmem [shape: f32[1,32], index: 1, kind: input, shape index: {}]
  %s2 = inlined_call_operand.vmem [shape: f32[1,32], index: 2, kind: input, shape index: {}]
  %s3 = inlined_call_operand.vmem [shape: f32[32,192], index: 3, kind: input, shape index: {}]
  %s4 = inlined_call_operand.vmem [shape: f32[1,32], index: 4, kind: input, shape index: {}]
  %s5 = inlined_call_operand.vmem [shape: f32[1,32], index: 5, kind: input, shape index: {}]
  %s6 = inlined_call_operand.vmem [shape: f32[1,32], index: 6, kind: input, shape index: {}]
  %s7 = inlined_call_operand.vmem [shape: f32[32,128], index: 7, kind: input, shape index: {}]
  %s8 = inlined_call_operand.vmem [shape: f32[1,128], index: 8, kind: input, shape index: {}]
  %s9 = inlined_call_operand.vmem [shape: f32[128,32], index: 9, kind: input, shape index: {}]
  %s10 = inlined_call_operand.vmem [shape: f32[1,32], index: 10, kind: input, shape index: {}]
  %s11 = inlined_call_operand.hbm [shape: f32[16,32], index: 11, kind: output, shape index: {}]
  %s12 = sld [smem:[#allocation0]]
  $region54: #{tpu_custom_call.1} parent=0
    _
  %s14 = ssub.s32 1, %s12
  %s15 = scalar_select 0, %s14, %s12
  $region1: #{tpu_custom_call.1} parent=0
    #allocation2 [shape = 'u8[8192]{0}', space=vmem, size = 0x2000, scoped, tag = 'output window, operand 0, single buffered']
    #allocation3 [shape = 's32[1]{0}', space=sflag, size = 0x4, scoped, tag = 'scoped memory for tpu_custom_call.1']
    %16 = vsyncpa [#allocation3], 0
    // Predicated region
    $region2: #{tpu_custom_call.1} parent=1 // pred_check
      _
    $region3: #{tpu_custom_call.1} parent=1 // pred_check_branch
      %18 = sbr.rel (0) target = $region5
    $region4: #{tpu_custom_call.1} parent=1 // pred_region
      _
    $region5: #{tpu_custom_call.1} parent=1 // pred_fallthru
      _
    // Predicated region
    $region6: #{tpu_custom_call.1} parent=1 // pred_check
      _
    $region7: #{tpu_custom_call.1} parent=1 // pred_check_branch
      %20 = sbr.rel (0) target = $region9
    $region8: #{tpu_custom_call.1} parent=1 // pred_region
      _
    $region9: #{tpu_custom_call.1} parent=1 // pred_fallthru
      _
    // Predicated region
    $region10: #{tpu_custom_call.1} parent=1 // pred_check
      _
    $region11: #{tpu_custom_call.1} parent=1 // pred_check_branch
      %22 = sbr.rel (0) target = $region13
    $region12: #{tpu_custom_call.1} parent=1 // pred_region
      _
    $region13: #{tpu_custom_call.1} parent=1 // pred_fallthru
      _
    // Predicated region
    $region14: #{tpu_custom_call.1} parent=1 // pred_check
      _
    $region15: #{tpu_custom_call.1} parent=1 // pred_check_branch
      %24 = sbr.rel (0) target = $region17
    $region16: #{tpu_custom_call.1} parent=1 // pred_region
      _
    $region17: #{tpu_custom_call.1} parent=1 // pred_fallthru
      _
    // Predicated region
    $region18: #{tpu_custom_call.1} parent=1 // pred_check
      _
    $region19: #{tpu_custom_call.1} parent=1 // pred_check_branch
      %26 = sbr.rel (0) target = $region21
    $region20: #{tpu_custom_call.1} parent=1 // pred_region
      _
    $region21: #{tpu_custom_call.1} parent=1 // pred_fallthru
      _
    // Predicated region
    $region22: #{tpu_custom_call.1} parent=1 // pred_check
      _
    $region23: #{tpu_custom_call.1} parent=1 // pred_check_branch
      %28 = sbr.rel (0) target = $region25
    $region24: #{tpu_custom_call.1} parent=1 // pred_region
      _
    $region25: #{tpu_custom_call.1} parent=1 // pred_fallthru
      _
    // Predicated region
    $region26: #{tpu_custom_call.1} parent=1 // pred_check
      _
    $region27: #{tpu_custom_call.1} parent=1 // pred_check_branch
      %30 = sbr.rel (0) target = $region29
    $region28: #{tpu_custom_call.1} parent=1 // pred_region
      _
    $region29: #{tpu_custom_call.1} parent=1 // pred_fallthru
      _
    // Predicated region
    $region30: #{tpu_custom_call.1} parent=1 // pred_check
      _
    $region31: #{tpu_custom_call.1} parent=1 // pred_check_branch
      %32 = sbr.rel (0) target = $region33
    $region32: #{tpu_custom_call.1} parent=1 // pred_region
      _
    $region33: #{tpu_custom_call.1} parent=1 // pred_fallthru
      _
    // Predicated region
    $region34: #{tpu_custom_call.1} parent=1 // pred_check
      _
    $region35: #{tpu_custom_call.1} parent=1 // pred_check_branch
      %34 = sbr.rel (0) target = $region37
    $region36: #{tpu_custom_call.1} parent=1 // pred_region
      _
    $region37: #{tpu_custom_call.1} parent=1 // pred_fallthru
      _
    // Predicated region
    $region38: #{tpu_custom_call.1} parent=1 // pred_check
      _
    $region39: #{tpu_custom_call.1} parent=1 // pred_check_branch
      %36 = sbr.rel (0) target = $region41
    $region40: #{tpu_custom_call.1} parent=1 // pred_region
      _
    $region41: #{tpu_custom_call.1} parent=1 // pred_fallthru
      _
    // Predicated region
    $region42: #{tpu_custom_call.1} parent=1 // pred_check
      _
    $region43: #{tpu_custom_call.1} parent=1 // pred_check_branch
      %38 = sbr.rel (0) target = $region45
    $region44: #{tpu_custom_call.1} parent=1 // pred_region
      _
    $region45: #{tpu_custom_call.1} parent=1 // pred_fallthru
      _
    %v39 = vld [vmem:[%s0] sm:$0xff]
    %v40 = vld [vmem:[%s0 + $0x8] sm:$0xff]
    %v41 = vld [vmem:[%s1] sm:$0x1]
    %v42 = vld [vmem:[%s2] sm:$0x1]
    %vm43 = vcmask 261120
    %v44 = vsel %vm43, %v39, 0.0
    %45 = vadd.xlane.f32.xlu0 %v44
    %v46 = vpop.xlane.xlu0 %45
    %v47 = vsel %vm43, %v40, 0.0
    %48 = vadd.xlane.f32.xlu0 %v47
    %v49 = vpop.xlane.xlu0 %48
    %v50 = vmul.f32 %v39, %v39
    %v51 = vmul.f32 %v40, %v40
    %v52 = vsel %vm43, %v50, 0.0
    %53 = vadd.xlane.f32.xlu0 %v52
    %v54 = vpop.xlane.xlu0 %53
    %v55 = vsel %vm43, %v51, 0.0
    %56 = vadd.xlane.f32.xlu0 %v55
    %v57 = vpop.xlane.xlu0 %56
    %v58 = vmul.f32 %v46, 0.03125
    %v59 = vmul.f32 %v49, 0.03125
    %v60 = vmul.f32 %v54, 0.03125
    %v61 = vmul.f32 %v57, 0.03125
    %v62 = vmul.f32 %v58, %v58
    %v63 = vmul.f32 %v59, %v59
    %v64 = vsub.f32 %v60, %v62
    %v65 = vsub.f32 %v61, %v63
    %v66 = vsub.f32 %v39, %v58
    %v67 = vsub.f32 %v40, %v59
    %v68 = vadd.f32 %v64, 1e-05
    %v69 = vadd.f32 %v65, 1e-05
    %v70 = vrsqrt.pop %v68
    %v71 = vmul.f32 %v70, %v68
    %v72 = vmul.f32 %v71, %v70
    %v73 = vmul.f32 0.5, %v72
    %v74 = vsub.f32 1.5, %v73
    %v75 = vmul.f32 %v70, %v74
    %vm76 = vweird.f32 %v68
    %vm77 = vweird.f32 %v70
    %vm78 = vmor %vm76, %vm77
    %v79 = vsel %vm78, %v70, %v75
    %v80 = vrsqrt.pop %v69
    %v81 = vmul.f32 %v80, %v69
    %v82 = vmul.f32 %v81, %v80
    %v83 = vmul.f32 0.5, %v82
    %v84 = vsub.f32 1.5, %v83
    %v85 = vmul.f32 %v80, %v84
    %vm86 = vweird.f32 %v69
    %vm87 = vweird.f32 %v80
    %vm88 = vmor %vm86, %vm87
    %v89 = vsel %vm88, %v80, %v85
    %v90 = vmul.f32 %v66, %v79
    %v91 = vmul.f32 %v67, %v89
    %v93 = vperm.slane %v41, 0
    %v95 = vmul.f32 %v90, %v93
    %v96 = vmul.f32 %v91, %v93
    %v98 = vperm.slane %v42, 0
    %v100 = vadd.f32 %v95, %v98
    %v101 = vadd.f32 %v96, %v98
    %v102 = vld [vmem:[%s3] sm:$0xff]
    %v103 = vld [vmem:[%s3 + $0x8] sm:$0xff]
    %v104 = vld [vmem:[%s3 + $0x10] sm:$0xff]
    %v105 = vld [vmem:[%s3 + $0x18] sm:$0xff]
    %v106 = vld [vmem:[%s3 + $0x20] sm:$0xff]
    %v107 = vld [vmem:[%s3 + $0x28] sm:$0xff]
    %v108 = vld [vmem:[%s3 + $0x30] sm:$0xff]
    %v109 = vld [vmem:[%s3 + $0x38] sm:$0xff]
    %v111 = vsel %vm43, %v100, 0
    %v114 = vsel %vm43, %v101, 0
    %116 = vmatpush.msra.mxu0 0.0
    %117 = vmatpush.msra.mxu0 0.0
    %118 = vmatpush.msra.mxu0 0.0
    %119 = vmatpush.msra.mxu0 0.0
    %120 = vmatpush.msra.mxu0 0.0
    %121 = vmatpush.msra.mxu0 0.0
    %122 = vmatpush.msra.mxu0 0.0
    %123 = vmatpush.msra.mxu0 0.0
    %124 = vmatpush.msra.mxu0 0.0
    %125 = vmatpush.msra.mxu0 0.0
    %126 = vmatpush.msra.mxu0 0.0
    %127 = vmatpush.msra.mxu0 0.0
    %128 = vmatpush.msra.mxu0 %v108
    %129 = vmatpush.msra.mxu0 %v106
    %130 = vmatpush.msra.mxu0 %v104
    %131 = vmatpush.msra.mxu0 %v102
    %132 = vmatmul.f32.gmra.mxu0 %v111
    %v133 = vpop.f32.mrf.mxu0
    %v134 = vadd.f32 0.0, %v133
    %135 = vmatmul.f32.gmra.mxu0 %v114
    %v136 = vpop.f32.mrf.mxu0
    %v137 = vadd.f32 0.0, %v136
    %138 = vdwg.mxu0
    %139 = vmatpush.msra.mxu0 0.0
    %140 = vmatpush.msra.mxu0 0.0
    %141 = vmatpush.msra.mxu0 0.0
    %142 = vmatpush.msra.mxu0 0.0
    %143 = vmatpush.msra.mxu0 0.0
    %144 = vmatpush.msra.mxu0 0.0
    %145 = vmatpush.msra.mxu0 0.0
    %146 = vmatpush.msra.mxu0 0.0
    %147 = vmatpush.msra.mxu0 0.0
    %148 = vmatpush.msra.mxu0 0.0
    %149 = vmatpush.msra.mxu0 0.0
    %150 = vmatpush.msra.mxu0 0.0
    %151 = vmatpush.msra.mxu0 %v109
    %152 = vmatpush.msra.mxu0 %v107
    %153 = vmatpush.msra.mxu0 %v105
    %154 = vmatpush.msra.mxu0 %v103
    %155 = vmatmul.f32.gmra.mxu0 %v111
    %v156 = vpop.f32.mrf.mxu0
    %v157 = vadd.f32 0.0, %v156
    %158 = vmatmul.f32.gmra.mxu0 %v114
    %v159 = vpop.f32.mrf.mxu0
    %v160 = vadd.f32 0.0, %v159
    %161 = vdwg.mxu0
    %163 = vrot.lane.b32.xlu0 %v134, 96
    %v164 = vpop.permute.xlu0 %163
    %vm165 = vcmask 64512
    %v166 = vsel %vm165, %v134, 0
    %v168 = vsel %vm165, %v164, 0
    %170 = vmatpush.xpose.msra.mxu0 0.0
    %171 = vmatpush.xpose.msra.mxu0 0.0
    %172 = vmatpush.xpose.msra.mxu0 0.0
    %173 = vmatpush.xpose.msra.mxu0 0.0
    %174 = vmatpush.xpose.msra.mxu0 0.0
    %175 = vmatpush.xpose.msra.mxu0 0.0
    %176 = vmatpush.xpose.msra.mxu0 0.0
    %177 = vmatpush.xpose.msra.mxu0 0.0
    %178 = vmatpush.xpose.msra.mxu0 0.0
    %179 = vmatpush.xpose.msra.mxu0 0.0
    %180 = vmatpush.xpose.msra.mxu0 0.0
    %181 = vmatpush.xpose.msra.mxu0 0.0
    %182 = vmatpush.xpose.msra.mxu0 0.0
    %183 = vmatpush.xpose.msra.mxu0 0.0
    %184 = vmatpush.xpose.msra.mxu0 0.0
    %185 = vmatpush.xpose.msra.mxu0 %v168
    %186 = vmatmul.f32.gmra.mxu0 %v166
    %v187 = vpop.f32.mrf.mxu0
    %v188 = vadd.f32 0.0, %v187
    %189 = vdwg.mxu0
    %191 = vrot.lane.b32.xlu0 %v137, 96
    %v192 = vpop.permute.xlu0 %191
    %v193 = vsel %vm165, %v137, 0
    %v195 = vsel %vm165, %v192, 0
    %197 = vmatpush.xpose.msra.mxu0 0.0
    %198 = vmatpush.xpose.msra.mxu0 0.0
    %199 = vmatpush.xpose.msra.mxu0 0.0
    %200 = vmatpush.xpose.msra.mxu0 0.0
    %201 = vmatpush.xpose.msra.mxu0 0.0
    %202 = vmatpush.xpose.msra.mxu0 0.0
    %203 = vmatpush.xpose.msra.mxu0 0.0
    %204 = vmatpush.xpose.msra.mxu0 0.0
    %205 = vmatpush.xpose.msra.mxu0 0.0
    %206 = vmatpush.xpose.msra.mxu0 0.0
    %207 = vmatpush.xpose.msra.mxu0 0.0
    %208 = vmatpush.xpose.msra.mxu0 0.0
    %209 = vmatpush.xpose.msra.mxu0 0.0
    %210 = vmatpush.xpose.msra.mxu0 0.0
    %211 = vmatpush.xpose.msra.mxu0 0.0
    %212 = vmatpush.xpose.msra.mxu0 %v195
    %213 = vmatmul.f32.gmra.mxu0 %v193
    %v214 = vpop.f32.mrf.mxu0
    %v215 = vadd.f32 0.0, %v214
    %216 = vdwg.mxu0
    %v217 = vsel %vm165, %v188, -inf
    %218 = vmax.xlane.f32.xlu0 %v217
    %v219 = vpop.xlane.xlu0 %218
    %v220 = vsel %vm165, %v215, -inf
    %221 = vmax.xlane.f32.xlu0 %v220
    %v222 = vpop.xlane.xlu0 %221
    %v223 = vsub.f32 %v188, %v219
    %v224 = vsub.f32 %v215, %v222
    %v225 = vmul.f32 %v223, 1.442695
    %v226 = vpow.pop %v225
    %v227 = vmul.f32 %v224, 1.442695
    %v228 = vpow.pop %v227
    %v229 = vsel %vm165, %v226, 0.0
    %230 = vadd.xlane.f32.xlu0 %v229
    %v231 = vpop.xlane.xlu0 %230
    %v232 = vsel %vm165, %v228, 0.0
    %233 = vadd.xlane.f32.xlu0 %v232
    %v234 = vpop.xlane.xlu0 %233
    %v235 = vrcp.pop %v231
    %v236 = vrcp.pop %v234
    %v237 = vmul.f32 %v226, %v235
    %v238 = vmul.f32 %v228, %v236
    %239 = vrot.lane.b32.xlu0 %v134, 120
    %v240 = vpop.permute.xlu0 %239
    %241 = vrot.lane.b32.xlu0 %v134, 88
    %v242 = vpop.permute.xlu0 %241
    %v243 = vsel %vm165, %v240, 0
    %v245 = vsel %vm165, %v242, 0
    %247 = vmatpush.xpose.msra.mxu0 0.0
    %248 = vmatpush.xpose.msra.mxu0 0.0
    %249 = vmatpush.xpose.msra.mxu0 0.0
    %250 = vmatpush.xpose.msra.mxu0 0.0
    %251 = vmatpush.xpose.msra.mxu0 0.0
    %252 = vmatpush.xpose.msra.mxu0 0.0
    %253 = vmatpush.xpose.msra.mxu0 0.0
    %254 = vmatpush.xpose.msra.mxu0 0.0
    %255 = vmatpush.xpose.msra.mxu0 0.0
    %256 = vmatpush.xpose.msra.mxu0 0.0
    %257 = vmatpush.xpose.msra.mxu0 0.0
    %258 = vmatpush.xpose.msra.mxu0 0.0
    %259 = vmatpush.xpose.msra.mxu0 0.0
    %260 = vmatpush.xpose.msra.mxu0 0.0
    %261 = vmatpush.xpose.msra.mxu0 0.0
    %262 = vmatpush.xpose.msra.mxu0 %v245
    %263 = vmatmul.f32.gmra.mxu0 %v243
    %v264 = vpop.f32.mrf.mxu0
    %v265 = vadd.f32 0.0, %v264
    %266 = vdwg.mxu0
    %267 = vrot.lane.b32.xlu0 %v137, 120
    %v268 = vpop.permute.xlu0 %267
    %269 = vrot.lane.b32.xlu0 %v137, 88
    %v270 = vpop.permute.xlu0 %269
    %v271 = vsel %vm165, %v268, 0
    %v273 = vsel %vm165, %v270, 0
    %275 = vmatpush.xpose.msra.mxu0 0.0
    %276 = vmatpush.xpose.msra.mxu0 0.0
    %277 = vmatpush.xpose.msra.mxu0 0.0
    %278 = vmatpush.xpose.msra.mxu0 0.0
    %279 = vmatpush.xpose.msra.mxu0 0.0
    %280 = vmatpush.xpose.msra.mxu0 0.0
    %281 = vmatpush.xpose.msra.mxu0 0.0
    %282 = vmatpush.xpose.msra.mxu0 0.0
    %283 = vmatpush.xpose.msra.mxu0 0.0
    %284 = vmatpush.xpose.msra.mxu0 0.0
    %285 = vmatpush.xpose.msra.mxu0 0.0
    %286 = vmatpush.xpose.msra.mxu0 0.0
    %287 = vmatpush.xpose.msra.mxu0 0.0
    %288 = vmatpush.xpose.msra.mxu0 0.0
    %289 = vmatpush.xpose.msra.mxu0 0.0
    %290 = vmatpush.xpose.msra.mxu0 %v273
    %291 = vmatmul.f32.gmra.mxu0 %v271
    %v292 = vpop.f32.mrf.mxu0
    %v293 = vadd.f32 0.0, %v292
    %294 = vdwg.mxu0
    %v295 = vsel %vm165, %v265, -inf
    %296 = vmax.xlane.f32.xlu0 %v295
    %v297 = vpop.xlane.xlu0 %296
    %v298 = vsel %vm165, %v293, -inf
    %299 = vmax.xlane.f32.xlu0 %v298
    %v300 = vpop.xlane.xlu0 %299
    %v301 = vsub.f32 %v265, %v297
    %v302 = vsub.f32 %v293, %v300
    %v303 = vmul.f32 %v301, 1.442695
    %v304 = vpow.pop %v303
    %v305 = vmul.f32 %v302, 1.442695
    %v306 = vpow.pop %v305
    %v307 = vsel %vm165, %v304, 0.0
    %308 = vadd.xlane.f32.xlu0 %v307
    %v309 = vpop.xlane.xlu0 %308
    %v310 = vsel %vm165, %v306, 0.0
    %311 = vadd.xlane.f32.xlu0 %v310
    %v312 = vpop.xlane.xlu0 %311
    %v313 = vrcp.pop %v309
    %v314 = vrcp.pop %v312
    %v315 = vmul.f32 %v304, %v313
    %v316 = vmul.f32 %v306, %v314
    %317 = vrot.lane.b32.xlu0 %v134, 32
    %v318 = vpop.permute.xlu0 %317
    %v321 = vsel %vm165, %v315, 0
    %323 = vmatpush.msra.mxu0 0.0
    %324 = vmatpush.msra.mxu0 0.0
    %325 = vmatpush.msra.mxu0 0.0
    %326 = vmatpush.msra.mxu0 0.0
    %327 = vmatpush.msra.mxu0 0.0
    %328 = vmatpush.msra.mxu0 0.0
    %329 = vmatpush.msra.mxu0 0.0
    %330 = vmatpush.msra.mxu0 0.0
    %331 = vmatpush.msra.mxu0 0.0
    %332 = vmatpush.msra.mxu0 0.0
    %333 = vmatpush.msra.mxu0 0.0
    %334 = vmatpush.msra.mxu0 0.0
    %335 = vmatpush.msra.mxu0 0.0
    %336 = vmatpush.msra.mxu0 0.0
    %337 = vmatpush.msra.mxu0 0.0
    %338 = vmatpush.msra.mxu0 %v318
    %339 = vmatmul.f32.gmra.mxu0 %v321
    %v340 = vpop.f32.mrf.mxu0
    %v341 = vadd.f32 0.0, %v340
    %342 = vdwg.mxu0
    %343 = vrot.lane.b32.xlu0 %v137, 32
    %v344 = vpop.permute.xlu0 %343
    %v347 = vsel %vm165, %v316, 0
    %349 = vmatpush.msra.mxu0 0.0
    %350 = vmatpush.msra.mxu0 0.0
    %351 = vmatpush.msra.mxu0 0.0
    %352 = vmatpush.msra.mxu0 0.0
    %353 = vmatpush.msra.mxu0 0.0
    %354 = vmatpush.msra.mxu0 0.0
    %355 = vmatpush.msra.mxu0 0.0
    %356 = vmatpush.msra.mxu0 0.0
    %357 = vmatpush.msra.mxu0 0.0
    %358 = vmatpush.msra.mxu0 0.0
    %359 = vmatpush.msra.mxu0 0.0
    %360 = vmatpush.msra.mxu0 0.0
    %361 = vmatpush.msra.mxu0 0.0
    %362 = vmatpush.msra.mxu0 0.0
    %363 = vmatpush.msra.mxu0 0.0
    %364 = vmatpush.msra.mxu0 %v344
    %365 = vmatmul.f32.gmra.mxu0 %v347
    %v366 = vpop.f32.mrf.mxu0
    %v367 = vadd.f32 0.0, %v366
    %368 = vdwg.mxu0
    %369 = vrot.lane.b32.xlu0 %v134, 64
    %v370 = vpop.permute.xlu0 %369
    %v373 = vsel %vm165, %v237, 0
    %375 = vmatpush.msra.mxu0 0.0
    %376 = vmatpush.msra.mxu0 0.0
    %377 = vmatpush.msra.mxu0 0.0
    %378 = vmatpush.msra.mxu0 0.0
    %379 = vmatpush.msra.mxu0 0.0
    %380 = vmatpush.msra.mxu0 0.0
    %381 = vmatpush.msra.mxu0 0.0
    %382 = vmatpush.msra.mxu0 0.0
    %383 = vmatpush.msra.mxu0 0.0
    %384 = vmatpush.msra.mxu0 0.0
    %385 = vmatpush.msra.mxu0 0.0
    %386 = vmatpush.msra.mxu0 0.0
    %387 = vmatpush.msra.mxu0 0.0
    %388 = vmatpush.msra.mxu0 0.0
    %389 = vmatpush.msra.mxu0 0.0
    %390 = vmatpush.msra.mxu0 %v370
    %391 = vmatmul.f32.gmra.mxu0 %v373
    %v392 = vpop.f32.mrf.mxu0
    %v393 = vadd.f32 %v341, %v392
    %394 = vdwg.mxu0
    %395 = vrot.lane.b32.xlu0 %v137, 64
    %v396 = vpop.permute.xlu0 %395
    %v399 = vsel %vm165, %v238, 0
    %401 = vmatpush.msra.mxu0 0.0
    %402 = vmatpush.msra.mxu0 0.0
    %403 = vmatpush.msra.mxu0 0.0
    %404 = vmatpush.msra.mxu0 0.0
    %405 = vmatpush.msra.mxu0 0.0
    %406 = vmatpush.msra.mxu0 0.0
    %407 = vmatpush.msra.mxu0 0.0
    %408 = vmatpush.msra.mxu0 0.0
    %409 = vmatpush.msra.mxu0 0.0
    %410 = vmatpush.msra.mxu0 0.0
    %411 = vmatpush.msra.mxu0 0.0
    %412 = vmatpush.msra.mxu0 0.0
    %413 = vmatpush.msra.mxu0 0.0
    %414 = vmatpush.msra.mxu0 0.0
    %415 = vmatpush.msra.mxu0 0.0
    %416 = vmatpush.msra.mxu0 %v396
    %417 = vmatmul.f32.gmra.mxu0 %v399
    %v418 = vpop.f32.mrf.mxu0
    %v419 = vadd.f32 %v367, %v418
    %420 = vdwg.mxu0
    %421 = vrot.lane.b32.xlu0 %v134, 112
    %v422 = vpop.permute.xlu0 %421
    %423 = vrot.lane.b32.xlu0 %v134, 80
    %v424 = vpop.permute.xlu0 %423
    %v425 = vsel %vm165, %v422, 0
    %v427 = vsel %vm165, %v424, 0
    %429 = vmatpush.xpose.msra.mxu0 0.0
    %430 = vmatpush.xpose.msra.mxu0 0.0
    %431 = vmatpush.xpose.msra.mxu0 0.0
    %432 = vmatpush.xpose.msra.mxu0 0.0
    %433 = vmatpush.xpose.msra.mxu0 0.0
    %434 = vmatpush.xpose.msra.mxu0 0.0
    %435 = vmatpush.xpose.msra.mxu0 0.0
    %436 = vmatpush.xpose.msra.mxu0 0.0
    %437 = vmatpush.xpose.msra.mxu0 0.0
    %438 = vmatpush.xpose.msra.mxu0 0.0
    %439 = vmatpush.xpose.msra.mxu0 0.0
    %440 = vmatpush.xpose.msra.mxu0 0.0
    %441 = vmatpush.xpose.msra.mxu0 0.0
    %442 = vmatpush.xpose.msra.mxu0 0.0
    %443 = vmatpush.xpose.msra.mxu0 0.0
    %444 = vmatpush.xpose.msra.mxu0 %v427
    %445 = vmatmul.f32.gmra.mxu0 %v425
    %v446 = vpop.f32.mrf.mxu0
    %v447 = vadd.f32 0.0, %v446
    %448 = vdwg.mxu0
    %449 = vrot.lane.b32.xlu0 %v137, 112
    %v450 = vpop.permute.xlu0 %449
    %451 = vrot.lane.b32.xlu0 %v137, 80
    %v452 = vpop.permute.xlu0 %451
    %v453 = vsel %vm165, %v450, 0
    %v455 = vsel %vm165, %v452, 0
    %457 = vmatpush.xpose.msra.mxu0 0.0
    %458 = vmatpush.xpose.msra.mxu0 0.0
    %459 = vmatpush.xpose.msra.mxu0 0.0
    %460 = vmatpush.xpose.msra.mxu0 0.0
    %461 = vmatpush.xpose.msra.mxu0 0.0
    %462 = vmatpush.xpose.msra.mxu0 0.0
    %463 = vmatpush.xpose.msra.mxu0 0.0
    %464 = vmatpush.xpose.msra.mxu0 0.0
    %465 = vmatpush.xpose.msra.mxu0 0.0
    %466 = vmatpush.xpose.msra.mxu0 0.0
    %467 = vmatpush.xpose.msra.mxu0 0.0
    %468 = vmatpush.xpose.msra.mxu0 0.0
    %469 = vmatpush.xpose.msra.mxu0 0.0
    %470 = vmatpush.xpose.msra.mxu0 0.0
    %471 = vmatpush.xpose.msra.mxu0 0.0
    %472 = vmatpush.xpose.msra.mxu0 %v455
    %473 = vmatmul.f32.gmra.mxu0 %v453
    %v474 = vpop.f32.mrf.mxu0
    %v475 = vadd.f32 0.0, %v474
    %476 = vdwg.mxu0
    %v477 = vsel %vm165, %v447, -inf
    %478 = vmax.xlane.f32.xlu0 %v477
    %v479 = vpop.xlane.xlu0 %478
    %v480 = vsel %vm165, %v475, -inf
    %481 = vmax.xlane.f32.xlu0 %v480
    %v482 = vpop.xlane.xlu0 %481
    %v483 = vsub.f32 %v447, %v479
    %v484 = vsub.f32 %v475, %v482
    %v485 = vmul.f32 %v483, 1.442695
    %v486 = vpow.pop %v485
    %v487 = vmul.f32 %v484, 1.442695
    %v488 = vpow.pop %v487
    %v489 = vsel %vm165, %v486, 0.0
    %490 = vadd.xlane.f32.xlu0 %v489
    %v491 = vpop.xlane.xlu0 %490
    %v492 = vsel %vm165, %v488, 0.0
    %493 = vadd.xlane.f32.xlu0 %v492
    %v494 = vpop.xlane.xlu0 %493
    %v495 = vrcp.pop %v491
    %v496 = vrcp.pop %v494
    %v497 = vmul.f32 %v486, %v495
    %v498 = vmul.f32 %v488, %v496
    %v500 = vsel %vm165, %v497, 0
    %502 = vmatpush.msra.mxu0 0.0
    %503 = vmatpush.msra.mxu0 0.0
    %504 = vmatpush.msra.mxu0 0.0
    %505 = vmatpush.msra.mxu0 0.0
    %506 = vmatpush.msra.mxu0 0.0
    %507 = vmatpush.msra.mxu0 0.0
    %508 = vmatpush.msra.mxu0 0.0
    %509 = vmatpush.msra.mxu0 0.0
    %510 = vmatpush.msra.mxu0 0.0
    %511 = vmatpush.msra.mxu0 0.0
    %512 = vmatpush.msra.mxu0 0.0
    %513 = vmatpush.msra.mxu0 0.0
    %514 = vmatpush.msra.mxu0 0.0
    %515 = vmatpush.msra.mxu0 0.0
    %516 = vmatpush.msra.mxu0 0.0
    %517 = vmatpush.msra.mxu0 %v157
    %518 = vmatmul.f32.gmra.mxu0 %v500
    %v519 = vpop.f32.mrf.mxu0
    %v520 = vadd.f32 0.0, %v519
    %521 = vdwg.mxu0
    %v523 = vsel %vm165, %v498, 0
    %525 = vmatpush.msra.mxu0 0.0
    %526 = vmatpush.msra.mxu0 0.0
    %527 = vmatpush.msra.mxu0 0.0
    %528 = vmatpush.msra.mxu0 0.0
    %529 = vmatpush.msra.mxu0 0.0
    %530 = vmatpush.msra.mxu0 0.0
    %531 = vmatpush.msra.mxu0 0.0
    %532 = vmatpush.msra.mxu0 0.0
    %533 = vmatpush.msra.mxu0 0.0
    %534 = vmatpush.msra.mxu0 0.0
    %535 = vmatpush.msra.mxu0 0.0
    %536 = vmatpush.msra.mxu0 0.0
    %537 = vmatpush.msra.mxu0 0.0
    %538 = vmatpush.msra.mxu0 0.0
    %539 = vmatpush.msra.mxu0 0.0
    %540 = vmatpush.msra.mxu0 %v160
    %541 = vmatmul.f32.gmra.mxu0 %v523
    %v542 = vpop.f32.mrf.mxu0
    %v543 = vadd.f32 0.0, %v542
    %544 = vdwg.mxu0
    %v545 = vadd.f32 %v393, %v520
    %v546 = vadd.f32 %v419, %v543
    %547 = vrot.lane.b32.xlu0 %v134, 104
    %v548 = vpop.permute.xlu0 %547
    %549 = vrot.lane.b32.xlu0 %v134, 72
    %v550 = vpop.permute.xlu0 %549
    %v551 = vsel %vm165, %v548, 0
    %v553 = vsel %vm165, %v550, 0
    %555 = vmatpush.xpose.msra.mxu0 0.0
    %556 = vmatpush.xpose.msra.mxu0 0.0
    %557 = vmatpush.xpose.msra.mxu0 0.0
    %558 = vmatpush.xpose.msra.mxu0 0.0
    %559 = vmatpush.xpose.msra.mxu0 0.0
    %560 = vmatpush.xpose.msra.mxu0 0.0
    %561 = vmatpush.xpose.msra.mxu0 0.0
    %562 = vmatpush.xpose.msra.mxu0 0.0
    %563 = vmatpush.xpose.msra.mxu0 0.0
    %564 = vmatpush.xpose.msra.mxu0 0.0
    %565 = vmatpush.xpose.msra.mxu0 0.0
    %566 = vmatpush.xpose.msra.mxu0 0.0
    %567 = vmatpush.xpose.msra.mxu0 0.0
    %568 = vmatpush.xpose.msra.mxu0 0.0
    %569 = vmatpush.xpose.msra.mxu0 0.0
    %570 = vmatpush.xpose.msra.mxu0 %v553
    %571 = vmatmul.f32.gmra.mxu0 %v551
    %v572 = vpop.f32.mrf.mxu0
    %v573 = vadd.f32 0.0, %v572
    %574 = vdwg.mxu0
    %575 = vrot.lane.b32.xlu0 %v137, 104
    %v576 = vpop.permute.xlu0 %575
    %577 = vrot.lane.b32.xlu0 %v137, 72
    %v578 = vpop.permute.xlu0 %577
    %v579 = vsel %vm165, %v576, 0
    %v581 = vsel %vm165, %v578, 0
    %583 = vmatpush.xpose.msra.mxu0 0.0
    %584 = vmatpush.xpose.msra.mxu0 0.0
    %585 = vmatpush.xpose.msra.mxu0 0.0
    %586 = vmatpush.xpose.msra.mxu0 0.0
    %587 = vmatpush.xpose.msra.mxu0 0.0
    %588 = vmatpush.xpose.msra.mxu0 0.0
    %589 = vmatpush.xpose.msra.mxu0 0.0
    %590 = vmatpush.xpose.msra.mxu0 0.0
    %591 = vmatpush.xpose.msra.mxu0 0.0
    %592 = vmatpush.xpose.msra.mxu0 0.0
    %593 = vmatpush.xpose.msra.mxu0 0.0
    %594 = vmatpush.xpose.msra.mxu0 0.0
    %595 = vmatpush.xpose.msra.mxu0 0.0
    %596 = vmatpush.xpose.msra.mxu0 0.0
    %597 = vmatpush.xpose.msra.mxu0 0.0
    %598 = vmatpush.xpose.msra.mxu0 %v581
    %599 = vmatmul.f32.gmra.mxu0 %v579
    %v600 = vpop.f32.mrf.mxu0
    %v601 = vadd.f32 0.0, %v600
    %602 = vdwg.mxu0
    %v603 = vsel %vm165, %v573, -inf
    %604 = vmax.xlane.f32.xlu0 %v603
    %v605 = vpop.xlane.xlu0 %604
    %v606 = vsel %vm165, %v601, -inf
    %607 = vmax.xlane.f32.xlu0 %v606
    %v608 = vpop.xlane.xlu0 %607
    %v609 = vsub.f32 %v573, %v605
    %v610 = vsub.f32 %v601, %v608
    %v611 = vmul.f32 %v609, 1.442695
    %v612 = vpow.pop %v611
    %v613 = vmul.f32 %v610, 1.442695
    %v614 = vpow.pop %v613
    %v615 = vsel %vm165, %v612, 0.0
    %616 = vadd.xlane.f32.xlu0 %v615
    %v617 = vpop.xlane.xlu0 %616
    %v618 = vsel %vm165, %v614, 0.0
    %619 = vadd.xlane.f32.xlu0 %v618
    %v620 = vpop.xlane.xlu0 %619
    %v621 = vrcp.pop %v617
    %v622 = vrcp.pop %v620
    %v623 = vmul.f32 %v612, %v621
    %v624 = vmul.f32 %v614, %v622
    %626 = vrot.lane.b32.xlu0 %v157, 96
    %v627 = vpop.permute.xlu0 %626
    %v630 = vsel %vm165, %v623, 0
    %632 = vmatpush.msra.mxu0 0.0
    %633 = vmatpush.msra.mxu0 0.0
    %634 = vmatpush.msra.mxu0 0.0
    %635 = vmatpush.msra.mxu0 0.0
    %636 = vmatpush.msra.mxu0 0.0
    %637 = vmatpush.msra.mxu0 0.0
    %638 = vmatpush.msra.mxu0 0.0
    %639 = vmatpush.msra.mxu0 0.0
    %640 = vmatpush.msra.mxu0 0.0
    %641 = vmatpush.msra.mxu0 0.0
    %642 = vmatpush.msra.mxu0 0.0
    %643 = vmatpush.msra.mxu0 0.0
    %644 = vmatpush.msra.mxu0 0.0
    %645 = vmatpush.msra.mxu0 0.0
    %646 = vmatpush.msra.mxu0 0.0
    %647 = vmatpush.msra.mxu0 %v627
    %648 = vmatmul.f32.gmra.mxu0 %v630
    %v649 = vpop.f32.mrf.mxu0
    %v650 = vadd.f32 0.0, %v649
    %651 = vdwg.mxu0
    %653 = vrot.lane.b32.xlu0 %v160, 96
    %v654 = vpop.permute.xlu0 %653
    %v657 = vsel %vm165, %v624, 0
    %659 = vmatpush.msra.mxu0 0.0
    %660 = vmatpush.msra.mxu0 0.0
    %661 = vmatpush.msra.mxu0 0.0
    %662 = vmatpush.msra.mxu0 0.0
    %663 = vmatpush.msra.mxu0 0.0
    %664 = vmatpush.msra.mxu0 0.0
    %665 = vmatpush.msra.mxu0 0.0
    %666 = vmatpush.msra.mxu0 0.0
    %667 = vmatpush.msra.mxu0 0.0
    %668 = vmatpush.msra.mxu0 0.0
    %669 = vmatpush.msra.mxu0 0.0
    %670 = vmatpush.msra.mxu0 0.0
    %671 = vmatpush.msra.mxu0 0.0
    %672 = vmatpush.msra.mxu0 0.0
    %673 = vmatpush.msra.mxu0 0.0
    %674 = vmatpush.msra.mxu0 %v654
    %675 = vmatmul.f32.gmra.mxu0 %v657
    %v676 = vpop.f32.mrf.mxu0
    %v677 = vadd.f32 0.0, %v676
    %678 = vdwg.mxu0
    %v679 = vadd.f32 %v545, %v650
    %v680 = vadd.f32 %v546, %v677
    %v681 = vld [vmem:[%s4] sm:$0x1]
    %v683 = vperm.slane %v681, 0
    %v685 = vadd.f32 %v679, %v683
    %v686 = vadd.f32 %v680, %v683
    %v687 = vadd.f32 %v39, %v685
    %v688 = vadd.f32 %v40, %v686
    %v689 = vld [vmem:[%s5] sm:$0x1]
    %v690 = vld [vmem:[%s6] sm:$0x1]
    %v691 = vsel %vm43, %v687, 0.0
    %692 = vadd.xlane.f32.xlu0 %v691
    %v693 = vpop.xlane.xlu0 %692
    %v694 = vsel %vm43, %v688, 0.0
    %695 = vadd.xlane.f32.xlu0 %v694
    %v696 = vpop.xlane.xlu0 %695
    %v697 = vmul.f32 %v687, %v687
    %v698 = vmul.f32 %v688, %v688
    %v699 = vsel %vm43, %v697, 0.0
    %700 = vadd.xlane.f32.xlu0 %v699
    %v701 = vpop.xlane.xlu0 %700
    %v702 = vsel %vm43, %v698, 0.0
    %703 = vadd.xlane.f32.xlu0 %v702
    %v704 = vpop.xlane.xlu0 %703
    %v705 = vmul.f32 %v693, 0.03125
    %v706 = vmul.f32 %v696, 0.03125
    %v707 = vmul.f32 %v701, 0.03125
    %v708 = vmul.f32 %v704, 0.03125
    %v709 = vmul.f32 %v705, %v705
    %v710 = vmul.f32 %v706, %v706
    %v711 = vsub.f32 %v707, %v709
    %v712 = vsub.f32 %v708, %v710
    %v713 = vsub.f32 %v687, %v705
    %v714 = vsub.f32 %v688, %v706
    %v715 = vadd.f32 %v711, 1e-05
    %v716 = vadd.f32 %v712, 1e-05
    %v717 = vrsqrt.pop %v715
    %v718 = vmul.f32 %v717, %v715
    %v719 = vmul.f32 %v718, %v717
    %v720 = vmul.f32 0.5, %v719
    %v721 = vsub.f32 1.5, %v720
    %v722 = vmul.f32 %v717, %v721
    %vm723 = vweird.f32 %v715
    %vm724 = vweird.f32 %v717
    %vm725 = vmor %vm723, %vm724
    %v726 = vsel %vm725, %v717, %v722
    %v727 = vrsqrt.pop %v716
    %v728 = vmul.f32 %v727, %v716
    %v729 = vmul.f32 %v728, %v727
    %v730 = vmul.f32 0.5, %v729
    %v731 = vsub.f32 1.5, %v730
    %v732 = vmul.f32 %v727, %v731
    %vm733 = vweird.f32 %v716
    %vm734 = vweird.f32 %v727
    %vm735 = vmor %vm733, %vm734
    %v736 = vsel %vm735, %v727, %v732
    %v737 = vmul.f32 %v713, %v726
    %v738 = vmul.f32 %v714, %v736
    %v740 = vperm.slane %v689, 0
    %v742 = vmul.f32 %v737, %v740
    %v743 = vmul.f32 %v738, %v740
    %v745 = vperm.slane %v690, 0
    %v747 = vadd.f32 %v742, %v745
    %v748 = vadd.f32 %v743, %v745
    %v749 = vld [vmem:[%s7] sm:$0xff]
    %v750 = vld [vmem:[%s7 + $0x8] sm:$0xff]
    %v751 = vld [vmem:[%s7 + $0x10] sm:$0xff]
    %v752 = vld [vmem:[%s7 + $0x18] sm:$0xff]
    %v753 = vld [vmem:[%s8] sm:$0x1]
    %v755 = vperm.slane %v753, 0
    %v758 = vsel %vm43, %v747, 0
    %v761 = vsel %vm43, %v748, 0
    %763 = vmatpush.msra.mxu0 0.0
    %764 = vmatpush.msra.mxu0 0.0
    %765 = vmatpush.msra.mxu0 0.0
    %766 = vmatpush.msra.mxu0 0.0
    %767 = vmatpush.msra.mxu0 0.0
    %768 = vmatpush.msra.mxu0 0.0
    %769 = vmatpush.msra.mxu0 0.0
    %770 = vmatpush.msra.mxu0 0.0
    %771 = vmatpush.msra.mxu0 0.0
    %772 = vmatpush.msra.mxu0 0.0
    %773 = vmatpush.msra.mxu0 0.0
    %774 = vmatpush.msra.mxu0 0.0
    %775 = vmatpush.msra.mxu0 %v752
    %776 = vmatpush.msra.mxu0 %v751
    %777 = vmatpush.msra.mxu0 %v750
    %778 = vmatpush.msra.mxu0 %v749
    %779 = vmatmul.f32.gmra.mxu0 %v758
    %v780 = vpop.f32.mrf.mxu0
    %v781 = vadd.f32 %v755, %v780
    %782 = vmatmul.f32.gmra.mxu0 %v761
    %v783 = vpop.f32.mrf.mxu0
    %v784 = vadd.f32 %v755, %v783
    %785 = vdwg.mxu0
    %v786 = vmul.f32 %v781, 0.5
    %v787 = vmul.f32 %v784, 0.5
    %v788 = vmul.f32 %v781, 0.044715
    %v789 = vmul.f32 %v784, 0.044715
    %v790 = vmul.f32 %v788, %v781
    %v791 = vmul.f32 %v789, %v784
    %v792 = vmul.f32 %v790, %v781
    %v793 = vmul.f32 %v791, %v784
    %v794 = vadd.f32 %v781, %v792
    %v795 = vadd.f32 %v784, %v793
    %v796 = vmul.f32 %v794, 0.7978846
    %v797 = vmul.f32 %v795, 0.7978846
    %v798 = vtanh.pop %v796
    %v799 = vtanh.pop %v797
    %v800 = vadd.f32 %v798, 1.0
    %v801 = vadd.f32 %v799, 1.0
    %v802 = vmul.f32 %v786, %v800
    %v803 = vmul.f32 %v787, %v801
    %v804 = vld [vmem:[%s9] sm:$0xff]
    %v805 = vld [vmem:[%s9 + $0x8] sm:$0xff]
    %v806 = vld [vmem:[%s9 + $0x10] sm:$0xff]
    %v807 = vld [vmem:[%s9 + $0x18] sm:$0xff]
    %v808 = vld [vmem:[%s9 + $0x20] sm:$0xff]
    %v809 = vld [vmem:[%s9 + $0x28] sm:$0xff]
    %v810 = vld [vmem:[%s9 + $0x30] sm:$0xff]
    %v811 = vld [vmem:[%s9 + $0x38] sm:$0xff]
    %v812 = vld [vmem:[%s9 + $0x40] sm:$0xff]
    %v813 = vld [vmem:[%s9 + $0x48] sm:$0xff]
    %v814 = vld [vmem:[%s9 + $0x50] sm:$0xff]
    %v815 = vld [vmem:[%s9 + $0x58] sm:$0xff]
    %v816 = vld [vmem:[%s9 + $0x60] sm:$0xff]
    %v817 = vld [vmem:[%s9 + $0x68] sm:$0xff]
    %v818 = vld [vmem:[%s9 + $0x70] sm:$0xff]
    %v819 = vld [vmem:[%s9 + $0x78] sm:$0xff]
    %v820 = vld [vmem:[%s10] sm:$0x1]
    %v822 = vperm.slane %v820, 0
    %824 = vmatpush.msra.mxu0 %v819
    %825 = vmatpush.msra.mxu0 %v818
    %826 = vmatpush.msra.mxu0 %v817
    %827 = vmatpush.msra.mxu0 %v816
    %828 = vmatpush.msra.mxu0 %v815
    %829 = vmatpush.msra.mxu0 %v814
    %830 = vmatpush.msra.mxu0 %v813
    %831 = vmatpush.msra.mxu0 %v812
    %832 = vmatpush.msra.mxu0 %v811
    %833 = vmatpush.msra.mxu0 %v810
    %834 = vmatpush.msra.mxu0 %v809
    %835 = vmatpush.msra.mxu0 %v808
    %836 = vmatpush.msra.mxu0 %v807
    %837 = vmatpush.msra.mxu0 %v806
    %838 = vmatpush.msra.mxu0 %v805
    %839 = vmatpush.msra.mxu0 %v804
    %840 = vmatmul.f32.gmra.mxu0 %v802
    %v841 = vpop.f32.mrf.mxu0
    %v842 = vadd.f32 %v822, %v841
    %843 = vmatmul.f32.gmra.mxu0 %v803
    %v844 = vpop.f32.mrf.mxu0
    %v845 = vadd.f32 %v822, %v844
    %846 = vdwg.mxu0
    %v847 = vadd.f32 %v687, %v842
    %v848 = vadd.f32 %v688, %v845
    %849 = vst.msk [vmem:[#allocation2] sm:$0xff] %vm43, %v847
    %850 = vst.msk [vmem:[#allocation2 + $0x8] sm:$0xff] %vm43, %v848
    // Predicated region
    $region46: #{tpu_custom_call.1} parent=1 // pred_check
      _
    $region47: #{tpu_custom_call.1} parent=1 // pred_check_branch
      %852 = sbr.rel (0) target = $region49
    $region48: #{tpu_custom_call.1} parent=1 // pred_region
      %854 = vsyncadd [#allocation3], 0
      %s855 = sshll.u32 [#allocation2], 4
      %s856 = int_to_ptr.vmem [resolvable:$true] %s855
      %s857 = sshll.u32 %s11, 4
      %s858 = int_to_ptr.hbm [resolvable:$true] %s857
      %863 = dma.vmem_to_hbm [thread:$0]  %s856, 256, %s858, [#allocation3], 128, 128, 8
    $region49: #{tpu_custom_call.1} parent=1 // pred_fallthru
      _
    // Predicated region
    $region50: #{tpu_custom_call.1} parent=1 // pred_check
      _
    $region51: #{tpu_custom_call.1} parent=1 // pred_check_branch
      %865 = sbr.rel (0) target = $region53
    $region52: #{tpu_custom_call.1} parent=1 // pred_region
      %867 = dma.done [#allocation3], 256
    $region53: #{tpu_custom_call.1} parent=1 // pred_fallthru
      _
    %868 = vsyncpa [#allocation3], 1

</llo_original>
